<compile_context>
chip_gen: v6e
topology: v6e:2x2x1
jax: 0.10.0
libtpu: 0.0.40
codegen_flags: <defaults>
</compile_context>

<pallas_src>
from functools import partial

import jax
import jax.numpy as jnp
from jax.experimental import pallas as pl
from jax.experimental.pallas import tpu as pltpu


def _autoencoder_kernel(x_ref,
                        w1_ref, b1_ref,
                        w2_ref, b2_ref,
                        w3_ref, b3_ref,
                        w4_ref, b4_ref,
                        o_ref):
    """Fused encoder+decoder forward for one batch tile.

    encoder: Linear(in, od/2) -> ReLU -> Linear(od/2, od/4) -> ReLU
    decoder: Linear(od/4, od/2) -> ReLU -> Linear(od/2, od) -> Sigmoid
    then nan_to_num(nan=0, posinf=1, neginf=0).
    Matmuls run bf16 x bf16 on the MXU with f32 accumulation; bias-add / ReLU /
    sigmoid / NaN cleanup run in f32 on the VPU/EUP.
    """
    x = x_ref[...]  # already bf16 (cast in the jitted wrapper)

    # --- encoder ---
    h = jnp.dot(x, w1_ref[...], preferred_element_type=jnp.float32) + b1_ref[...]
    h = jnp.maximum(h, 0.0).astype(jnp.bfloat16)

    h = jnp.dot(h, w2_ref[...], preferred_element_type=jnp.float32) + b2_ref[...]
    h = jnp.maximum(h, 0.0).astype(jnp.bfloat16)

    # --- decoder ---
    h = jnp.dot(h, w3_ref[...], preferred_element_type=jnp.float32) + b3_ref[...]
    h = jnp.maximum(h, 0.0).astype(jnp.bfloat16)

    y = jnp.dot(h, w4_ref[...], preferred_element_type=jnp.float32) + b4_ref[...]
    y = jax.nn.sigmoid(y)

    # torch.nan_to_num(nan=0, posinf=1, neginf=0): sigmoid is bounded in [0, 1]
    # and sigmoid(+/-inf) is finite, so only the NaN branch is reachable.
    # (If the output activation ever changes, the posinf/neginf clamps must return.)
    y = jnp.where(jnp.isnan(y), jnp.float32(0.0), y)

    o_ref[...] = y.astype(o_ref.dtype)


def _num_tensorcores():
    """Best-effort TensorCore count of device 0 (v5e/v6e: 1, v7x: 2)."""
    dev = jax.devices()[0]
    for attr in ("num_cores", "core_count"):
        n = getattr(dev, attr, None)
        if isinstance(n, int) and n > 0:
            return min(n, 4)
    return 1


def _pick_batch_tile(batch, requested, num_cores):
    """Largest multiple-of-8 divisor of `batch` <= requested.

    Single-TC chips get one full-batch step (grid steps are a serial loop that
    costs ~0.35 us each); multi-TC chips keep >= num_cores steps so the
    'parallel' grid axis can be sharded across cores.
    """
    requested = max(8, min(requested, batch))
    divisors = [t for t in range(8, requested + 1, 8) if batch % t == 0]
    if not divisors:
        return batch  # block == full batch dim, satisfies the (8,128) rule
    if num_cores > 1:
        multi = [t for t in divisors if batch // t >= num_cores]
        if multi:
            return max(multi)
    return max(divisors)


def prepare_params(params):
    """One-time dtype prep: weights -> bf16 (native MXU dtype), biases -> f32."""
    out = {}
    for i in (1, 2, 3, 4):
        out[f"w{i}"] = params[f"w{i}"].astype(jnp.bfloat16)
        out[f"b{i}"] = params[f"b{i}"].astype(jnp.float32)
    return out


@partial(jax.jit, static_argnames=("batch_tile",))
def autoencoder_forward(x, params, batch_tile=256):
    """x: (B, input_dim) float32. params: dict of (in, out) weights / (1, out) biases."""
    B, in_dim = x.shape

    # No-ops when params came through prepare_params; otherwise jit fuses /
    # constant-folds these casts into the compiled program (no eager dispatch).
    ws = [params[f"w{i}"].astype(jnp.bfloat16) for i in (1, 2, 3, 4)]
    bs = [params[f"b{i}"].astype(jnp.float32) for i in (1, 2, 3, 4)]
    h1, h2, out_dim = ws[0].shape[1], ws[1].shape[1], ws[3].shape[1]

    flat_params = []
    for w, b in zip(ws, bs):
        flat_params += [w, b]
    param_bytes = sum(p.size * p.dtype.itemsize for p in flat_params)

    # Resident-weight design has a hard VMEM ceiling (smallest on v7x: 64 MiB).
    if 2 * param_bytes > 16 * 1024 * 1024:
        # TODO(synk): add a K/N-tiled reduction path (grid over K, f32 accumulator
        # scratch with pl.when init/finalize) for weights that don't fit in VMEM.
        raise NotImplementedError(
            "Model dims too large for the resident-weight Pallas kernel.")

    num_cores = _num_tensorcores()
    tile = _pick_batch_tile(B, batch_tile, num_cores)
    grid = (B // tile if B % tile == 0 else 1,)

    # Cost hint so XLA can schedule/overlap the custom call sensibly.
    flops = 2 * B * (in_dim * h1 + h1 * h2 + h2 * h1 + h1 * out_dim)
    bytes_accessed = (B * in_dim * 2            # bf16 input
                      + B * out_dim * 4         # f32 output
                      + param_bytes)
    cost = pl.CostEstimate(flops=flops,
                           transcendentals=B * out_dim,   # sigmoid
                           bytes_accessed=bytes_accessed)

    # VMEM budget: double-buffered x/out tiles, default-double-buffered resident
    # weights, plus f32 intermediates. Cap at 48 MiB to keep headroom under the
    # smallest physical VMEM (v7x: 64 MiB per TensorCore).
    vmem_est = (2 * tile * in_dim * 2
                + 2 * tile * out_dim * 4
                + 2 * param_bytes
                + tile * (h1 + h2 + h1 + out_dim) * 4)
    vmem_limit = int(min(48 * 1024 * 1024,
                         max(2 * vmem_est, 16 * 1024 * 1024)))

    # Feed x in bf16: halves input DMA / double-buffer VMEM; the cast fuses
    # into the producer under jit.
    x_bf16 = x.astype(jnp.bfloat16)

    in_specs = [pl.BlockSpec((tile, in_dim), lambda i: (i, 0))]
    for p in flat_params:  # grid-invariant weight/bias blocks stay resident
        in_specs.append(pl.BlockSpec(p.shape, lambda i: (0, 0)))
    out_specs = pl.BlockSpec((tile, out_dim), lambda i: (i, 0))

    return pl.pallas_call(
        _autoencoder_kernel,
        out_shape=jax.ShapeDtypeStruct((B, out_dim), jnp.float32),
        grid_spec=pltpu.PrefetchScalarGridSpec(
            num_scalar_prefetch=0,
            grid=grid,
            in_specs=in_specs,
            out_specs=out_specs),
        compiler_params=pltpu.CompilerParams(
            dimension_semantics=("parallel",),
            vmem_limit_bytes=vmem_limit),
        cost_estimate=cost,
    )(x_bf16, *flat_params)


def init_params(key, input_dim, output_dim, size_ratio=0.5):
    """nn.Linear-style init (U(-1/sqrt(fan_in), 1/sqrt(fan_in))), weights as (in, out)."""
    h1 = int(output_dim * size_ratio)        # output_dim // 2
    h2 = int(h1 * size_ratio)                # output_dim // 4
    dims = [(input_dim, h1), (h1, h2), (h2, h1), (h1, output_dim)]
    params = {}
    for idx, (fan_in, fan_out) in enumerate(dims, start=1):
        key, kw, kb = jax.random.split(key, 3)
        bound = 1.0 / jnp.sqrt(jnp.float32(fan_in))
        params[f"w{idx}"] = jax.random.uniform(
            kw, (fan_in, fan_out), jnp.float32, -bound, bound)
        params[f"b{idx}"] = jax.random.uniform(
            kb, (1, fan_out), jnp.float32, -bound, bound)
    return params


def autoencoder_ref_bf16(x, params):
    """Reference matching the kernel's bf16-MXU / f32-accumulate numerics."""
    def layer(h, w, b):
        return jnp.dot(h.astype(jnp.bfloat16), w.astype(jnp.bfloat16),
                       preferred_element_type=jnp.float32) + b.astype(jnp.float32)
    h = jnp.maximum(layer(x, params["w1"], params["b1"]), 0.0)
    h = jnp.maximum(layer(h, params["w2"], params["b2"]), 0.0)
    h = jnp.maximum(layer(h, params["w3"], params["b3"]), 0.0)
    y = jax.nn.sigmoid(layer(h, params["w4"], params["b4"]))
    return jnp.where(jnp.isnan(y), 0.0, y)


def autoencoder_ref_f32(x, params):
    """Pure-f32 reference of the original PyTorch module semantics."""
    h = jnp.maximum(x @ params["w1"] + params["b1"], 0.0)
    h = jnp.maximum(h @ params["w2"] + params["b2"], 0.0)
    h = jnp.maximum(h @ params["w3"] + params["b3"], 0.0)
    y = jax.nn.sigmoid(h @ params["w4"] + params["b4"])
    y = jnp.where(jnp.isnan(y), 0.0, y)
    y = jnp.where(y == jnp.inf, 1.0, y)
    y = jnp.where(y == -jnp.inf, 0.0, y)
    return y


if __name__ == "__main__":
    # Small demo shapes: batch=64, input_dim=output_dim=128 -> hidden sizes 64, 32.
    B, INPUT_DIM, OUTPUT_DIM = 64, 128, 128

    key = jax.random.PRNGKey(0)
    key, kx = jax.random.split(key)
    x = jax.random.normal(kx, (B, INPUT_DIM), jnp.float32)

    params_f32 = init_params(key, INPUT_DIM, OUTPUT_DIM)
    params = prepare_params(params_f32)   # one-time bf16-weight / f32-bias cast

    out = jax.block_until_ready(autoencoder_forward(x, params))
    assert out.shape == (B, OUTPUT_DIM)
    assert out.dtype == jnp.float32

    # Tight check vs. a reference with identical bf16-matmul / f32-accumulate numerics.
    ref_matched = autoencoder_ref_bf16(x, params)
    assert jnp.allclose(out, ref_matched, atol=2e-3, rtol=2e-3), \
        "mismatch vs bf16-matmul JAX reference"
    # Loose semantic check vs. the pure-f32 module reference (bf16 weights deviate
    # from the f32 PyTorch module; tolerance grows ~sqrt(K)*bf16_eps with dims).
    ref_f32 = autoencoder_ref_f32(x, params_f32)
    assert jnp.allclose(out, ref_f32, atol=2e-2, rtol=0.0), \
        "mismatch vs f32 JAX reference"

    print("KERNEL_OK")
</pallas_src>

<mosaic_0001>
module attributes {stable_mosaic.version = 11 : i64} {
  func.func @_autoencoder_kernel(%arg0: i32, %arg1: memref<64x128xbf16, #tpu.memory_space<vmem>>, %arg2: memref<128x64xbf16, #tpu.memory_space<vmem>>, %arg3: memref<1x64xf32, #tpu.memory_space<vmem>>, %arg4: memref<64x32xbf16, #tpu.memory_space<vmem>>, %arg5: memref<1x32xf32, #tpu.memory_space<vmem>>, %arg6: memref<32x64xbf16, #tpu.memory_space<vmem>>, %arg7: memref<1x64xf32, #tpu.memory_space<vmem>>, %arg8: memref<64x128xbf16, #tpu.memory_space<vmem>>, %arg9: memref<1x128xf32, #tpu.memory_space<vmem>>, %arg10: memref<64x128xf32, #tpu.memory_space<vmem>>) attributes {dimension_semantics = [#tpu.dimension_semantics<parallel>], iteration_bounds = array<i64: 1>, scalar_prefetch = 0 : i64, scratch_operands = 0 : i64, tpu.core_type = #tpu.core_type<tc>, window_params = [{transform_indices = @transform_0, window_bounds = array<i64: 64, 128>}, {pipeline_mode = #tpu.pipeline_mode<synchronous>, transform_indices = @transform_1, window_bounds = array<i64: 128, 64>}, {pipeline_mode = #tpu.pipeline_mode<synchronous>, transform_indices = @transform_2, window_bounds = array<i64: 1, 64>}, {pipeline_mode = #tpu.pipeline_mode<synchronous>, transform_indices = @transform_3, window_bounds = array<i64: 64, 32>}, {pipeline_mode = #tpu.pipeline_mode<synchronous>, transform_indices = @transform_4, window_bounds = array<i64: 1, 32>}, {pipeline_mode = #tpu.pipeline_mode<synchronous>, transform_indices = @transform_5, window_bounds = array<i64: 32, 64>}, {pipeline_mode = #tpu.pipeline_mode<synchronous>, transform_indices = @transform_6, window_bounds = array<i64: 1, 64>}, {pipeline_mode = #tpu.pipeline_mode<synchronous>, transform_indices = @transform_7, window_bounds = array<i64: 64, 128>}, {pipeline_mode = #tpu.pipeline_mode<synchronous>, transform_indices = @transform_8, window_bounds = array<i64: 1, 128>}, {transform_indices = @transform_9, window_bounds = array<i64: 64, 128>}]} {
    %c0 = arith.constant 0 : index
    %c0_0 = arith.constant 0 : index
    %0 = vector.load %arg1[%c0, %c0_0] : memref<64x128xbf16, #tpu.memory_space<vmem>>, vector<64x128xbf16>
    %c0_1 = arith.constant 0 : index
    %c0_2 = arith.constant 0 : index
    %1 = vector.load %arg2[%c0_1, %c0_2] : memref<128x64xbf16, #tpu.memory_space<vmem>>, vector<128x64xbf16>
    %cst = arith.constant dense<0.000000e+00> : vector<64x64xf32>
    %2 = tpu.matmul %0, %1, %cst {dimension_numbers = #tpu.dot_dimension_numbers<[1], [0], [0], [1], [0, 0, 1, 1], [], []>} : vector<64x128xbf16>, vector<128x64xbf16>, vector<64x64xf32> -> vector<64x64xf32>
    %c0_3 = arith.constant 0 : index
    %c0_4 = arith.constant 0 : index
    %3 = vector.load %arg3[%c0_3, %c0_4] : memref<1x64xf32, #tpu.memory_space<vmem>>, vector<1x64xf32>
    %4 = vector.broadcast %3 : vector<1x64xf32> to vector<64x64xf32>
    %5 = arith.addf %2, %4 : vector<64x64xf32>
    %cst_5 = arith.constant 0.000000e+00 : f32
    %6 = vector.broadcast %cst_5 : f32 to vector<64x64xf32>
    %7 = arith.maximumf %5, %6 : vector<64x64xf32>
    %8 = arith.truncf %7 : vector<64x64xf32> to vector<64x64xbf16>
    %c0_6 = arith.constant 0 : index
    %c0_7 = arith.constant 0 : index
    %9 = vector.load %arg4[%c0_6, %c0_7] : memref<64x32xbf16, #tpu.memory_space<vmem>>, vector<64x32xbf16>
    %cst_8 = arith.constant dense<0.000000e+00> : vector<64x32xf32>
    %10 = tpu.matmul %8, %9, %cst_8 {dimension_numbers = #tpu.dot_dimension_numbers<[1], [0], [0], [1], [0, 0, 1, 1], [], []>} : vector<64x64xbf16>, vector<64x32xbf16>, vector<64x32xf32> -> vector<64x32xf32>
    %c0_9 = arith.constant 0 : index
    %c0_10 = arith.constant 0 : index
    %11 = vector.load %arg5[%c0_9, %c0_10] : memref<1x32xf32, #tpu.memory_space<vmem>>, vector<1x32xf32>
    %12 = vector.broadcast %11 : vector<1x32xf32> to vector<64x32xf32>
    %13 = arith.addf %10, %12 : vector<64x32xf32>
    %cst_11 = arith.constant 0.000000e+00 : f32
    %14 = vector.broadcast %cst_11 : f32 to vector<64x32xf32>
    %15 = arith.maximumf %13, %14 : vector<64x32xf32>
    %16 = arith.truncf %15 : vector<64x32xf32> to vector<64x32xbf16>
    %c0_12 = arith.constant 0 : index
    %c0_13 = arith.constant 0 : index
    %17 = vector.load %arg6[%c0_12, %c0_13] : memref<32x64xbf16, #tpu.memory_space<vmem>>, vector<32x64xbf16>
    %cst_14 = arith.constant dense<0.000000e+00> : vector<64x64xf32>
    %18 = tpu.matmul %16, %17, %cst_14 {dimension_numbers = #tpu.dot_dimension_numbers<[1], [0], [0], [1], [0, 0, 1, 1], [], []>} : vector<64x32xbf16>, vector<32x64xbf16>, vector<64x64xf32> -> vector<64x64xf32>
    %c0_15 = arith.constant 0 : index
    %c0_16 = arith.constant 0 : index
    %19 = vector.load %arg7[%c0_15, %c0_16] : memref<1x64xf32, #tpu.memory_space<vmem>>, vector<1x64xf32>
    %20 = vector.broadcast %19 : vector<1x64xf32> to vector<64x64xf32>
    %21 = arith.addf %18, %20 : vector<64x64xf32>
    %cst_17 = arith.constant 0.000000e+00 : f32
    %22 = vector.broadcast %cst_17 : f32 to vector<64x64xf32>
    %23 = arith.maximumf %21, %22 : vector<64x64xf32>
    %24 = arith.truncf %23 : vector<64x64xf32> to vector<64x64xbf16>
    %c0_18 = arith.constant 0 : index
    %c0_19 = arith.constant 0 : index
    %25 = vector.load %arg8[%c0_18, %c0_19] : memref<64x128xbf16, #tpu.memory_space<vmem>>, vector<64x128xbf16>
    %cst_20 = arith.constant dense<0.000000e+00> : vector<64x128xf32>
    %26 = tpu.matmul %24, %25, %cst_20 {dimension_numbers = #tpu.dot_dimension_numbers<[1], [0], [0], [1], [0, 0, 1, 1], [], []>} : vector<64x64xbf16>, vector<64x128xbf16>, vector<64x128xf32> -> vector<64x128xf32>
    %c0_21 = arith.constant 0 : index
    %c0_22 = arith.constant 0 : index
    %27 = vector.load %arg9[%c0_21, %c0_22] : memref<1x128xf32, #tpu.memory_space<vmem>>, vector<1x128xf32>
    %28 = vector.broadcast %27 : vector<1x128xf32> to vector<64x128xf32>
    %29 = arith.addf %26, %28 : vector<64x128xf32>
    %30 = arith.negf %29 : vector<64x128xf32>
    %31 = math.exp %30 : vector<64x128xf32>
    %cst_23 = arith.constant 1.000000e+00 : f32
    %32 = vector.broadcast %cst_23 : f32 to vector<64x128xf32>
    %33 = arith.addf %32, %31 : vector<64x128xf32>
    %34 = arith.divf %32, %33 : vector<64x128xf32>
    %35 = arith.cmpf one, %34, %34 : vector<64x128xf32>
    %cst_24 = arith.constant 0.000000e+00 : f32
    %36 = vector.broadcast %cst_24 : f32 to vector<64x128xf32>
    %37 = arith.select %35, %36, %34 : vector<64x128xi1>, vector<64x128xf32>
    %c0_25 = arith.constant 0 : index
    %c0_26 = arith.constant 0 : index
    %38 = vector.load %arg10[%c0_25, %c0_26] : memref<64x128xf32, #tpu.memory_space<vmem>>, vector<64x128xf32>
    tpu.vector_store %arg10[%c0_25, %c0_26], %37 {strides = array<i32>} : memref<64x128xf32, #tpu.memory_space<vmem>>, vector<64x128xf32>,
    return
  }
  func.func @transform_0(%arg0: i32) -> (i32, i32) {
    %c0_i32 = arith.constant 0 : i32
    %c0_i32_0 = arith.constant 0 : i32
    return %arg0, %c0_i32 : i32, i32
  }
  func.func @transform_1(%arg0: i32) -> (i32, i32) {
    %c0_i32 = arith.constant 0 : i32
    %c0_i32_0 = arith.constant 0 : i32
    %c0_i32_1 = arith.constant 0 : i32
    return %c0_i32, %c0_i32_0 : i32, i32
  }
  func.func @transform_2(%arg0: i32) -> (i32, i32) {
    %c0_i32 = arith.constant 0 : i32
    %c0_i32_0 = arith.constant 0 : i32
    %c0_i32_1 = arith.constant 0 : i32
    return %c0_i32, %c0_i32_0 : i32, i32
  }
  func.func @transform_3(%arg0: i32) -> (i32, i32) {
    %c0_i32 = arith.constant 0 : i32
    %c0_i32_0 = arith.constant 0 : i32
    %c0_i32_1 = arith.constant 0 : i32
    return %c0_i32, %c0_i32_0 : i32, i32
  }
  func.func @transform_4(%arg0: i32) -> (i32, i32) {
    %c0_i32 = arith.constant 0 : i32
    %c0_i32_0 = arith.constant 0 : i32
    %c0_i32_1 = arith.constant 0 : i32
    return %c0_i32, %c0_i32_0 : i32, i32
  }
  func.func @transform_5(%arg0: i32) -> (i32, i32) {
    %c0_i32 = arith.constant 0 : i32
    %c0_i32_0 = arith.constant 0 : i32
    %c0_i32_1 = arith.constant 0 : i32
    return %c0_i32, %c0_i32_0 : i32, i32
  }
  func.func @transform_6(%arg0: i32) -> (i32, i32) {
    %c0_i32 = arith.constant 0 : i32
    %c0_i32_0 = arith.constant 0 : i32
    %c0_i32_1 = arith.constant 0 : i32
    return %c0_i32, %c0_i32_0 : i32, i32
  }
  func.func @transform_7(%arg0: i32) -> (i32, i32) {
    %c0_i32 = arith.constant 0 : i32
    %c0_i32_0 = arith.constant 0 : i32
    %c0_i32_1 = arith.constant 0 : i32
    return %c0_i32, %c0_i32_0 : i32, i32
  }
  func.func @transform_8(%arg0: i32) -> (i32, i32) {
    %c0_i32 = arith.constant 0 : i32
    %c0_i32_0 = arith.constant 0 : i32
    %c0_i32_1 = arith.constant 0 : i32
    return %c0_i32, %c0_i32_0 : i32, i32
  }
  func.func @transform_9(%arg0: i32) -> (i32, i32) {
    %c0_i32 = arith.constant 0 : i32
    %c0_i32_0 = arith.constant 0 : i32
    return %arg0, %c0_i32 : i32, i32
  }
}

</mosaic_0001>

<llo_original>
// kernel: autoencoder_forward.1
$region0: #{autoencoder_forward.1}
  #allocation0 [shape = 'u32[]', space=smem, size = 0x4, offset = 0x4, fixed_abs, tag = 'smem constant byte address 0x4 - core index']
  #allocation1 [shape = 'u32[144,128]{1,0:T(1,128)}', space=vmem, size = 0x12000, scoped, tag = 'internal scratch']
  %s0 = inlined_call_operand.vmem [shape: bf16[64,128], index: 0, kind: input, shape index: {}]
  %s1 = inlined_call_operand.vmem [shape: bf16[128,64], index: 1, kind: input, shape index: {}]
  %s2 = inlined_call_operand.vmem [shape: f32[1,64], index: 2, kind: input, shape index: {}]
  %s3 = inlined_call_operand.vmem [shape: bf16[64,32], index: 3, kind: input, shape index: {}]
  %s4 = inlined_call_operand.vmem [shape: f32[1,32], index: 4, kind: input, shape index: {}]
  %s5 = inlined_call_operand.vmem [shape: bf16[32,64], index: 5, kind: input, shape index: {}]
  %s6 = inlined_call_operand.vmem [shape: f32[1,64], index: 6, kind: input, shape index: {}]
  %s7 = inlined_call_operand.vmem [shape: bf16[64,128], index: 7, kind: input, shape index: {}]
  %s8 = inlined_call_operand.vmem [shape: f32[1,128], index: 8, kind: input, shape index: {}]
  %s9 = inlined_call_operand.hbm [shape: f32[64,128], index: 9, kind: output, shape index: {}]
  %s10 = sld [smem:[#allocation0]]
  $region46: #{autoencoder_forward.1} parent=0
    _
  %s12 = ssub.s32 1, %s10
  %s13 = scalar_select 0, %s12, %s10
  $region1: #{autoencoder_forward.1} parent=0
    #allocation2 [shape = 'u8[32768]{0}', space=vmem, size = 0x8000, scoped, tag = 'output window, operand 0, single buffered']
    #allocation3 [shape = 's32[1]{0}', space=sflag, size = 0x4, scoped, tag = 'scoped memory for autoencoder_forward.1']
    %14 = vsyncpa [#allocation3], 0
    // Predicated region
    $region2: #{autoencoder_forward.1} parent=1 // pred_check
      _
    $region3: #{autoencoder_forward.1} parent=1 // pred_check_branch
      %16 = sbr.rel (0) target = $region5
    $region4: #{autoencoder_forward.1} parent=1 // pred_region
      _
    $region5: #{autoencoder_forward.1} parent=1 // pred_fallthru
      _
    // Predicated region
    $region6: #{autoencoder_forward.1} parent=1 // pred_check
      _
    $region7: #{autoencoder_forward.1} parent=1 // pred_check_branch
      %18 = sbr.rel (0) target = $region9
    $region8: #{autoencoder_forward.1} parent=1 // pred_region
      _
    $region9: #{autoencoder_forward.1} parent=1 // pred_fallthru
      _
    // Predicated region
    $region10: #{autoencoder_forward.1} parent=1 // pred_check
      _
    $region11: #{autoencoder_forward.1} parent=1 // pred_check_branch
      %20 = sbr.rel (0) target = $region13
    $region12: #{autoencoder_forward.1} parent=1 // pred_region
      _
    $region13: #{autoencoder_forward.1} parent=1 // pred_fallthru
      _
    // Predicated region
    $region14: #{autoencoder_forward.1} parent=1 // pred_check
      _
    $region15: #{autoencoder_forward.1} parent=1 // pred_check_branch
      %22 = sbr.rel (0) target = $region17
    $region16: #{autoencoder_forward.1} parent=1 // pred_region
      _
    $region17: #{autoencoder_forward.1} parent=1 // pred_fallthru
      _
    // Predicated region
    $region18: #{autoencoder_forward.1} parent=1 // pred_check
      _
    $region19: #{autoencoder_forward.1} parent=1 // pred_check_branch
      %24 = sbr.rel (0) target = $region21
    $region20: #{autoencoder_forward.1} parent=1 // pred_region
      _
    $region21: #{autoencoder_forward.1} parent=1 // pred_fallthru
      _
    // Predicated region
    $region22: #{autoencoder_forward.1} parent=1 // pred_check
      _
    $region23: #{autoencoder_forward.1} parent=1 // pred_check_branch
      %26 = sbr.rel (0) target = $region25
    $region24: #{autoencoder_forward.1} parent=1 // pred_region
      _
    $region25: #{autoencoder_forward.1} parent=1 // pred_fallthru
      _
    // Predicated region
    $region26: #{autoencoder_forward.1} parent=1 // pred_check
      _
    $region27: #{autoencoder_forward.1} parent=1 // pred_check_branch
      %28 = sbr.rel (0) target = $region29
    $region28: #{autoencoder_forward.1} parent=1 // pred_region
      _
    $region29: #{autoencoder_forward.1} parent=1 // pred_fallthru
      _
    // Predicated region
    $region30: #{autoencoder_forward.1} parent=1 // pred_check
      _
    $region31: #{autoencoder_forward.1} parent=1 // pred_check_branch
      %30 = sbr.rel (0) target = $region33
    $region32: #{autoencoder_forward.1} parent=1 // pred_region
      _
    $region33: #{autoencoder_forward.1} parent=1 // pred_fallthru
      _
    // Predicated region
    $region34: #{autoencoder_forward.1} parent=1 // pred_check
      _
    $region35: #{autoencoder_forward.1} parent=1 // pred_check_branch
      %32 = sbr.rel (0) target = $region37
    $region36: #{autoencoder_forward.1} parent=1 // pred_region
      _
    $region37: #{autoencoder_forward.1} parent=1 // pred_fallthru
      _
    %v34 = vld [vmem:[%s0] sm:$0xf]
    %v35 = vld [vmem:[%s0 + $0x4] sm:$0xf]
    %v36 = vld [vmem:[%s0 + $0x8] sm:$0xf]
    %v37 = vld [vmem:[%s0 + $0xc] sm:$0xf]
    %v38 = vld [vmem:[%s0 + $0x10] sm:$0xf]
    %v39 = vld [vmem:[%s0 + $0x14] sm:$0xf]
    %v40 = vld [vmem:[%s0 + $0x18] sm:$0xf]
    %v41 = vld [vmem:[%s0 + $0x1c] sm:$0xf]
    %v42 = vld [vmem:[%s1] sm:$0xf]
    %v43 = vld [vmem:[%s1 + $0x4] sm:$0xf]
    %v44 = vld [vmem:[%s1 + $0x8] sm:$0xf]
    %v45 = vld [vmem:[%s1 + $0xc] sm:$0xf]
    %v46 = vld [vmem:[%s1 + $0x10] sm:$0xf]
    %v47 = vld [vmem:[%s1 + $0x14] sm:$0xf]
    %v48 = vld [vmem:[%s1 + $0x18] sm:$0xf]
    %v49 = vld [vmem:[%s1 + $0x1c] sm:$0xf]
    %v50 = vld [vmem:[%s1 + $0x20] sm:$0xf]
    %v51 = vld [vmem:[%s1 + $0x24] sm:$0xf]
    %v52 = vld [vmem:[%s1 + $0x28] sm:$0xf]
    %v53 = vld [vmem:[%s1 + $0x2c] sm:$0xf]
    %v54 = vld [vmem:[%s1 + $0x30] sm:$0xf]
    %v55 = vld [vmem:[%s1 + $0x34] sm:$0xf]
    %v56 = vld [vmem:[%s1 + $0x38] sm:$0xf]
    %v57 = vld [vmem:[%s1 + $0x3c] sm:$0xf]
    %v58 = vld [vmem:[%s2] sm:$0x1]
    %v60 = vlaneseq
    %v61 = vshrl.u32 %v60, 7
    %v62 = vsub.s32 0, %v61
    %v63 = vrot.slane %v58, %v62
    %v73 = vunpack.c.l.b16 %v34
    %v74 = vunpack.c.l.b16 %v35
    %v75 = vunpack.c.l.b16 %v36
    %v76 = vunpack.c.l.b16 %v37
    %v77 = vunpack.c.l.b16 %v38
    %v78 = vunpack.c.l.b16 %v39
    %v79 = vunpack.c.l.b16 %v40
    %v80 = vunpack.c.l.b16 %v41
    %v81 = vpack.c.b16 %v74, %v73
    %v82 = vpack.c.b16 %v76, %v75
    %v83 = vpack.c.b16 %v78, %v77
    %v84 = vpack.c.b16 %v80, %v79
    %v105 = vunpack.c.l.b16 %v42
    %v106 = vunpack.c.l.b16 %v43
    %v107 = vunpack.c.l.b16 %v44
    %v108 = vunpack.c.l.b16 %v45
    %v109 = vunpack.c.l.b16 %v46
    %v110 = vunpack.c.l.b16 %v47
    %v111 = vunpack.c.l.b16 %v48
    %v112 = vunpack.c.l.b16 %v49
    %v113 = vunpack.c.l.b16 %v50
    %v114 = vunpack.c.l.b16 %v51
    %v115 = vunpack.c.l.b16 %v52
    %v116 = vunpack.c.l.b16 %v53
    %v117 = vunpack.c.l.b16 %v54
    %v118 = vunpack.c.l.b16 %v55
    %v119 = vunpack.c.l.b16 %v56
    %v120 = vunpack.c.l.b16 %v57
    %v121 = vpack.c.b16 %v106, %v105
    %v122 = vpack.c.b16 %v108, %v107
    %v123 = vpack.c.b16 %v110, %v109
    %v124 = vpack.c.b16 %v112, %v111
    %v125 = vpack.c.b16 %v114, %v113
    %v126 = vpack.c.b16 %v116, %v115
    %v127 = vpack.c.b16 %v118, %v117
    %v128 = vpack.c.b16 %v120, %v119
    %137 = vmatprep.subr.bf16.mxu0 0
    %138 = vmatpush1.bf16.msra.mxu0 %v128
    %139 = vmatprep.subr.bf16.mxu0 0
    %140 = vmatpush1.bf16.msra.mxu0 %v127
    %141 = vmatprep.subr.bf16.mxu0 0
    %142 = vmatpush1.bf16.msra.mxu0 %v126
    %143 = vmatprep.subr.bf16.mxu0 0
    %144 = vmatpush1.bf16.msra.mxu0 %v125
    %145 = vmatprep.subr.bf16.mxu0 0
    %146 = vmatpush1.bf16.msra.mxu0 %v124
    %147 = vmatprep.subr.bf16.mxu0 0
    %148 = vmatpush1.bf16.msra.mxu0 %v123
    %149 = vmatprep.subr.bf16.mxu0 0
    %150 = vmatpush1.bf16.msra.mxu0 %v122
    %151 = vmatprep.subr.bf16.mxu0 0
    %152 = vmatpush1.bf16.msra.mxu0 %v121
    %153 = vmatprep.subr.bf16.mxu0 0
    %154 = vmatpush2.bf16.msra.mxu0 0
    %155 = vmatprep.subr.bf16.mxu0 0
    %156 = vmatpush2.bf16.msra.mxu0 0
    %157 = vmatprep.subr.bf16.mxu0 0
    %158 = vmatpush2.bf16.msra.mxu0 0
    %159 = vmatprep.subr.bf16.mxu0 0
    %160 = vmatpush2.bf16.msra.mxu0 0
    %161 = vmatprep.subr.bf16.mxu0 0
    %162 = vmatpush2.bf16.msra.mxu0 0
    %163 = vmatprep.subr.bf16.mxu0 0
    %164 = vmatpush2.bf16.msra.mxu0 0
    %165 = vmatprep.subr.bf16.mxu0 0
    %166 = vmatpush2.bf16.msra.mxu0 0
    %167 = vmatprep.subr.bf16.mxu0 0
    %168 = vmatpush2.bf16.msra.mxu0 0
    %169 = vmatprep.mubr.bf16.mxu0 0
    %170 = vmatmul.mubr.bf16.gmra.mxu0 %v81
    %v171 = vpop.f32.mrf.mxu0
    %v172 = vadd.f32 %v63, %v171
    %v173 = vpop.f32.mrf.mxu0
    %v174 = vpop.f32.mrf.mxu0
    %v175 = vadd.f32 %v63, %v174
    %v176 = vpop.f32.mrf.mxu0
    %177 = vmatprep.mubr.bf16.mxu0 0
    %178 = vmatmul.mubr.bf16.gmra.mxu0 %v82
    %v179 = vpop.f32.mrf.mxu0
    %v180 = vadd.f32 %v63, %v179
    %v181 = vpop.f32.mrf.mxu0
    %v182 = vpop.f32.mrf.mxu0
    %v183 = vadd.f32 %v63, %v182
    %v184 = vpop.f32.mrf.mxu0
    %185 = vmatprep.mubr.bf16.mxu0 0
    %186 = vmatmul.mubr.bf16.gmra.mxu0 %v83
    %v187 = vpop.f32.mrf.mxu0
    %v188 = vadd.f32 %v63, %v187
    %v189 = vpop.f32.mrf.mxu0
    %v190 = vpop.f32.mrf.mxu0
    %v191 = vadd.f32 %v63, %v190
    %v192 = vpop.f32.mrf.mxu0
    %193 = vmatprep.mubr.bf16.mxu0 0
    %194 = vmatmul.mubr.bf16.gmra.mxu0 %v84
    %v195 = vpop.f32.mrf.mxu0
    %v196 = vadd.f32 %v63, %v195
    %v197 = vpop.f32.mrf.mxu0
    %v198 = vpop.f32.mrf.mxu0
    %v199 = vadd.f32 %v63, %v198
    %v200 = vpop.f32.mrf.mxu0
    %201 = vdwg.mxu0
    %v202 = vmax.f32 %v172, 0.0
    %v203 = vmax.f32 %v175, 0.0
    %v204 = vmax.f32 %v180, 0.0
    %v205 = vmax.f32 %v183, 0.0
    %v206 = vmax.f32 %v188, 0.0
    %v207 = vmax.f32 %v191, 0.0
    %v208 = vmax.f32 %v196, 0.0
    %v209 = vmax.f32 %v199, 0.0
    %v210 = vpack.c.bf16 %v203, %v202
    %v211 = vpack.c.bf16 %v205, %v204
    %v212 = vpack.c.bf16 %v207, %v206
    %v213 = vpack.c.bf16 %v209, %v208
    %v214 = vld [vmem:[%s3] sm:$0xf]
    %v215 = vld [vmem:[%s3 + $0x4] sm:$0xf]
    %v216 = vld [vmem:[%s3 + $0x8] sm:$0xf]
    %v217 = vld [vmem:[%s3 + $0xc] sm:$0xf]
    %v218 = vld [vmem:[%s3 + $0x10] sm:$0xf]
    %v219 = vld [vmem:[%s3 + $0x14] sm:$0xf]
    %v220 = vld [vmem:[%s3 + $0x18] sm:$0xf]
    %v221 = vld [vmem:[%s3 + $0x1c] sm:$0xf]
    %v222 = vld [vmem:[%s4] sm:$0x1]
    %v224 = vlaneseq
    %v225 = vshrl.u32 %v224, 7
    %v226 = vsub.s32 0, %v225
    %v227 = vrot.slane %v222, %v226
    %v237 = vunpack.c.l.b16 %v214
    %v238 = vunpack.c.l.b16 %v215
    %v239 = vunpack.c.l.b16 %v216
    %v240 = vunpack.c.l.b16 %v217
    %v241 = vunpack.c.l.b16 %v218
    %v242 = vunpack.c.l.b16 %v219
    %v243 = vunpack.c.l.b16 %v220
    %v244 = vunpack.c.l.b16 %v221
    %v245 = vpack.c.b16 %v238, %v237
    %v246 = vpack.c.b16 %v240, %v239
    %v247 = vpack.c.b16 %v242, %v241
    %v248 = vpack.c.b16 %v244, %v243
    %vm253 = vcmask 523264
    %v255 = vsel %vm253, %v210, 0
    %v258 = vsel %vm253, %v211, 0
    %v261 = vsel %vm253, %v212, 0
    %v264 = vsel %vm253, %v213, 0
    %266 = vmatprep.subr.bf16.mxu0 0
    %267 = vmatpush1.bf16.msra.mxu0 0
    %268 = vmatprep.subr.bf16.mxu0 0
    %269 = vmatpush1.bf16.msra.mxu0 0
    %270 = vmatprep.subr.bf16.mxu0 0
    %271 = vmatpush1.bf16.msra.mxu0 0
    %272 = vmatprep.subr.bf16.mxu0 0
    %273 = vmatpush1.bf16.msra.mxu0 0
    %274 = vmatprep.subr.bf16.mxu0 0
    %275 = vmatpush1.bf16.msra.mxu0 %v248
    %276 = vmatprep.subr.bf16.mxu0 0
    %277 = vmatpush1.bf16.msra.mxu0 %v247
    %278 = vmatprep.subr.bf16.mxu0 0
    %279 = vmatpush1.bf16.msra.mxu0 %v246
    %280 = vmatprep.subr.bf16.mxu0 0
    %281 = vmatpush1.bf16.msra.mxu0 %v245
    %282 = vmatprep.subr.bf16.mxu0 0
    %283 = vmatpush2.bf16.msra.mxu0 0
    %284 = vmatprep.subr.bf16.mxu0 0
    %285 = vmatpush2.bf16.msra.mxu0 0
    %286 = vmatprep.subr.bf16.mxu0 0
    %287 = vmatpush2.bf16.msra.mxu0 0
    %288 = vmatprep.subr.bf16.mxu0 0
    %289 = vmatpush2.bf16.msra.mxu0 0
    %290 = vmatprep.subr.bf16.mxu0 0
    %291 = vmatpush2.bf16.msra.mxu0 0
    %292 = vmatprep.subr.bf16.mxu0 0
    %293 = vmatpush2.bf16.msra.mxu0 0
    %294 = vmatprep.subr.bf16.mxu0 0
    %295 = vmatpush2.bf16.msra.mxu0 0
    %296 = vmatprep.subr.bf16.mxu0 0
    %297 = vmatpush2.bf16.msra.mxu0 0
    %298 = vmatprep.mubr.bf16.mxu0 0
    %299 = vmatmul.mubr.bf16.gmra.mxu0 %v255
    %v300 = vpop.f32.mrf.mxu0
    %v301 = vadd.f32 %v227, %v300
    %v302 = vpop.f32.mrf.mxu0
    %v303 = vpop.f32.mrf.mxu0
    %v304 = vadd.f32 %v227, %v303
    %v305 = vpop.f32.mrf.mxu0
    %306 = vmatprep.mubr.bf16.mxu0 0
    %307 = vmatmul.mubr.bf16.gmra.mxu0 %v258
    %v308 = vpop.f32.mrf.mxu0
    %v309 = vadd.f32 %v227, %v308
    %v310 = vpop.f32.mrf.mxu0
    %v311 = vpop.f32.mrf.mxu0
    %v312 = vadd.f32 %v227, %v311
    %v313 = vpop.f32.mrf.mxu0
    %314 = vmatprep.mubr.bf16.mxu0 0
    %315 = vmatmul.mubr.bf16.gmra.mxu0 %v261
    %v316 = vpop.f32.mrf.mxu0
    %v317 = vadd.f32 %v227, %v316
    %v318 = vpop.f32.mrf.mxu0
    %v319 = vpop.f32.mrf.mxu0
    %v320 = vadd.f32 %v227, %v319
    %v321 = vpop.f32.mrf.mxu0
    %322 = vmatprep.mubr.bf16.mxu0 0
    %323 = vmatmul.mubr.bf16.gmra.mxu0 %v264
    %v324 = vpop.f32.mrf.mxu0
    %v325 = vadd.f32 %v227, %v324
    %v326 = vpop.f32.mrf.mxu0
    %v327 = vpop.f32.mrf.mxu0
    %v328 = vadd.f32 %v227, %v327
    %v329 = vpop.f32.mrf.mxu0
    %330 = vdwg.mxu0
    %v331 = vmax.f32 %v301, 0.0
    %v332 = vmax.f32 %v304, 0.0
    %v333 = vmax.f32 %v309, 0.0
    %v334 = vmax.f32 %v312, 0.0
    %v335 = vmax.f32 %v317, 0.0
    %v336 = vmax.f32 %v320, 0.0
    %v337 = vmax.f32 %v325, 0.0
    %v338 = vmax.f32 %v328, 0.0
    %v339 = vpack.c.bf16 %v332, %v331
    %v340 = vpack.c.bf16 %v334, %v333
    %v341 = vpack.c.bf16 %v336, %v335
    %v342 = vpack.c.bf16 %v338, %v337
    %v343 = vld [vmem:[%s5] sm:$0xf]
    %v344 = vld [vmem:[%s5 + $0x4] sm:$0xf]
    %v345 = vld [vmem:[%s5 + $0x8] sm:$0xf]
    %v346 = vld [vmem:[%s5 + $0xc] sm:$0xf]
    %v347 = vld [vmem:[%s6] sm:$0x1]
    %v349 = vlaneseq
    %v350 = vshrl.u32 %v349, 7
    %v351 = vsub.s32 0, %v350
    %v352 = vrot.slane %v347, %v351
    %v358 = vunpack.c.l.b16 %v343
    %v359 = vunpack.c.l.b16 %v344
    %v360 = vunpack.c.l.b16 %v345
    %v361 = vunpack.c.l.b16 %v346
    %v362 = vpack.c.b16 %v359, %v358
    %v363 = vpack.c.b16 %v361, %v360
    %vm366 = vcmask 261120
    %v368 = vsel %vm366, %v339, 0
    %v371 = vsel %vm366, %v340, 0
    %v374 = vsel %vm366, %v341, 0
    %v377 = vsel %vm366, %v342, 0
    %379 = vmatprep.subr.bf16.mxu0 0
    %380 = vmatpush1.bf16.msra.mxu0 0
    %381 = vmatprep.subr.bf16.mxu0 0
    %382 = vmatpush1.bf16.msra.mxu0 0
    %383 = vmatprep.subr.bf16.mxu0 0
    %384 = vmatpush1.bf16.msra.mxu0 0
    %385 = vmatprep.subr.bf16.mxu0 0
    %386 = vmatpush1.bf16.msra.mxu0 0
    %387 = vmatprep.subr.bf16.mxu0 0
    %388 = vmatpush1.bf16.msra.mxu0 0
    %389 = vmatprep.subr.bf16.mxu0 0
    %390 = vmatpush1.bf16.msra.mxu0 0
    %391 = vmatprep.subr.bf16.mxu0 0
    %392 = vmatpush1.bf16.msra.mxu0 %v363
    %393 = vmatprep.subr.bf16.mxu0 0
    %394 = vmatpush1.bf16.msra.mxu0 %v362
    %395 = vmatprep.subr.bf16.mxu0 0
    %396 = vmatpush2.bf16.msra.mxu0 0
    %397 = vmatprep.subr.bf16.mxu0 0
    %398 = vmatpush2.bf16.msra.mxu0 0
    %399 = vmatprep.subr.bf16.mxu0 0
    %400 = vmatpush2.bf16.msra.mxu0 0
    %401 = vmatprep.subr.bf16.mxu0 0
    %402 = vmatpush2.bf16.msra.mxu0 0
    %403 = vmatprep.subr.bf16.mxu0 0
    %404 = vmatpush2.bf16.msra.mxu0 0
    %405 = vmatprep.subr.bf16.mxu0 0
    %406 = vmatpush2.bf16.msra.mxu0 0
    %407 = vmatprep.subr.bf16.mxu0 0
    %408 = vmatpush2.bf16.msra.mxu0 0
    %409 = vmatprep.subr.bf16.mxu0 0
    %410 = vmatpush2.bf16.msra.mxu0 0
    %411 = vmatprep.mubr.bf16.mxu0 0
    %412 = vmatmul.mubr.bf16.gmra.mxu0 %v368
    %v413 = vpop.f32.mrf.mxu0
    %v414 = vadd.f32 %v352, %v413
    %v415 = vpop.f32.mrf.mxu0
    %v416 = vpop.f32.mrf.mxu0
    %v417 = vadd.f32 %v352, %v416
    %v418 = vpop.f32.mrf.mxu0
    %419 = vmatprep.mubr.bf16.mxu0 0
    %420 = vmatmul.mubr.bf16.gmra.mxu0 %v371
    %v421 = vpop.f32.mrf.mxu0
    %v422 = vadd.f32 %v352, %v421
    %v423 = vpop.f32.mrf.mxu0
    %v424 = vpop.f32.mrf.mxu0
    %v425 = vadd.f32 %v352, %v424
    %v426 = vpop.f32.mrf.mxu0
    %427 = vmatprep.mubr.bf16.mxu0 0
    %428 = vmatmul.mubr.bf16.gmra.mxu0 %v374
    %v429 = vpop.f32.mrf.mxu0
    %v430 = vadd.f32 %v352, %v429
    %v431 = vpop.f32.mrf.mxu0
    %v432 = vpop.f32.mrf.mxu0
    %v433 = vadd.f32 %v352, %v432
    %v434 = vpop.f32.mrf.mxu0
    %435 = vmatprep.mubr.bf16.mxu0 0
    %436 = vmatmul.mubr.bf16.gmra.mxu0 %v377
    %v437 = vpop.f32.mrf.mxu0
    %v438 = vadd.f32 %v352, %v437
    %v439 = vpop.f32.mrf.mxu0
    %v440 = vpop.f32.mrf.mxu0
    %v441 = vadd.f32 %v352, %v440
    %v442 = vpop.f32.mrf.mxu0
    %443 = vdwg.mxu0
    %v444 = vmax.f32 %v414, 0.0
    %v445 = vmax.f32 %v417, 0.0
    %v446 = vmax.f32 %v422, 0.0
    %v447 = vmax.f32 %v425, 0.0
    %v448 = vmax.f32 %v430, 0.0
    %v449 = vmax.f32 %v433, 0.0
    %v450 = vmax.f32 %v438, 0.0
    %v451 = vmax.f32 %v441, 0.0
    %v452 = vpack.c.bf16 %v445, %v444
    %v453 = vpack.c.bf16 %v447, %v446
    %v454 = vpack.c.bf16 %v449, %v448
    %v455 = vpack.c.bf16 %v451, %v450
    %v456 = vld [vmem:[%s7] sm:$0xf]
    %v457 = vld [vmem:[%s7 + $0x4] sm:$0xf]
    %v458 = vld [vmem:[%s7 + $0x8] sm:$0xf]
    %v459 = vld [vmem:[%s7 + $0xc] sm:$0xf]
    %v460 = vld [vmem:[%s7 + $0x10] sm:$0xf]
    %v461 = vld [vmem:[%s7 + $0x14] sm:$0xf]
    %v462 = vld [vmem:[%s7 + $0x18] sm:$0xf]
    %v463 = vld [vmem:[%s7 + $0x1c] sm:$0xf]
    %v464 = vld [vmem:[%s8] sm:$0x1]
    %v466 = vlaneseq
    %v467 = vshrl.u32 %v466, 7
    %v468 = vsub.s32 0, %v467
    %v469 = vrot.slane %v464, %v468
    %v479 = vunpack.c.l.b16 %v456
    %v480 = vunpack.c.l.b16 %v457
    %v481 = vunpack.c.l.b16 %v458
    %v482 = vunpack.c.l.b16 %v459
    %v483 = vunpack.c.l.b16 %v460
    %v484 = vunpack.c.l.b16 %v461
    %v485 = vunpack.c.l.b16 %v462
    %v486 = vunpack.c.l.b16 %v463
    %v487 = vpack.c.b16 %v480, %v479
    %v488 = vpack.c.b16 %v482, %v481
    %v489 = vpack.c.b16 %v484, %v483
    %v490 = vpack.c.b16 %v486, %v485
    %v496 = vsel %vm253, %v452, 0
    %v499 = vsel %vm253, %v453, 0
    %v502 = vsel %vm253, %v454, 0
    %v505 = vsel %vm253, %v455, 0
    %507 = vmatprep.subr.bf16.mxu0 0
    %508 = vmatpush1.bf16.msra.mxu0 0
    %509 = vmatprep.subr.bf16.mxu0 0
    %510 = vmatpush1.bf16.msra.mxu0 0
    %511 = vmatprep.subr.bf16.mxu0 0
    %512 = vmatpush1.bf16.msra.mxu0 0
    %513 = vmatprep.subr.bf16.mxu0 0
    %514 = vmatpush1.bf16.msra.mxu0 0
    %515 = vmatprep.subr.bf16.mxu0 0
    %516 = vmatpush1.bf16.msra.mxu0 %v490
    %517 = vmatprep.subr.bf16.mxu0 0
    %518 = vmatpush1.bf16.msra.mxu0 %v489
    %519 = vmatprep.subr.bf16.mxu0 0
    %520 = vmatpush1.bf16.msra.mxu0 %v488
    %521 = vmatprep.subr.bf16.mxu0 0
    %522 = vmatpush1.bf16.msra.mxu0 %v487
    %523 = vmatprep.subr.bf16.mxu0 0
    %524 = vmatpush2.bf16.msra.mxu0 0
    %525 = vmatprep.subr.bf16.mxu0 0
    %526 = vmatpush2.bf16.msra.mxu0 0
    %527 = vmatprep.subr.bf16.mxu0 0
    %528 = vmatpush2.bf16.msra.mxu0 0
    %529 = vmatprep.subr.bf16.mxu0 0
    %530 = vmatpush2.bf16.msra.mxu0 0
    %531 = vmatprep.subr.bf16.mxu0 0
    %532 = vmatpush2.bf16.msra.mxu0 0
    %533 = vmatprep.subr.bf16.mxu0 0
    %534 = vmatpush2.bf16.msra.mxu0 0
    %535 = vmatprep.subr.bf16.mxu0 0
    %536 = vmatpush2.bf16.msra.mxu0 0
    %537 = vmatprep.subr.bf16.mxu0 0
    %538 = vmatpush2.bf16.msra.mxu0 0
    %539 = vmatprep.mubr.bf16.mxu0 0
    %540 = vmatmul.mubr.bf16.gmra.mxu0 %v496
    %v541 = vpop.f32.mrf.mxu0
    %v542 = vadd.f32 %v469, %v541
    %v543 = vpop.f32.mrf.mxu0
    %v544 = vpop.f32.mrf.mxu0
    %v545 = vadd.f32 %v469, %v544
    %v546 = vpop.f32.mrf.mxu0
    %547 = vmatprep.mubr.bf16.mxu0 0
    %548 = vmatmul.mubr.bf16.gmra.mxu0 %v499
    %v549 = vpop.f32.mrf.mxu0
    %v550 = vadd.f32 %v469, %v549
    %v551 = vpop.f32.mrf.mxu0
    %v552 = vpop.f32.mrf.mxu0
    %v553 = vadd.f32 %v469, %v552
    %v554 = vpop.f32.mrf.mxu0
    %555 = vmatprep.mubr.bf16.mxu0 0
    %556 = vmatmul.mubr.bf16.gmra.mxu0 %v502
    %v557 = vpop.f32.mrf.mxu0
    %v558 = vadd.f32 %v469, %v557
    %v559 = vpop.f32.mrf.mxu0
    %v560 = vpop.f32.mrf.mxu0
    %v561 = vadd.f32 %v469, %v560
    %v562 = vpop.f32.mrf.mxu0
    %563 = vmatprep.mubr.bf16.mxu0 0
    %564 = vmatmul.mubr.bf16.gmra.mxu0 %v505
    %v565 = vpop.f32.mrf.mxu0
    %v566 = vadd.f32 %v469, %v565
    %v567 = vpop.f32.mrf.mxu0
    %v568 = vpop.f32.mrf.mxu0
    %v569 = vadd.f32 %v469, %v568
    %v570 = vpop.f32.mrf.mxu0
    %571 = vdwg.mxu0
    %v572 = vxor.u32 %v542, 2147483648
    %v573 = vxor.u32 %v545, 2147483648
    %v574 = vxor.u32 %v550, 2147483648
    %v575 = vxor.u32 %v553, 2147483648
    %v576 = vxor.u32 %v558, 2147483648
    %v577 = vxor.u32 %v561, 2147483648
    %v578 = vxor.u32 %v566, 2147483648
    %v579 = vxor.u32 %v569, 2147483648
    %v580 = vmul.f32 %v572, 1.442695
    %v581 = vpow.pop %v580
    %v582 = vmul.f32 %v573, 1.442695
    %v583 = vpow.pop %v582
    %v584 = vmul.f32 %v574, 1.442695
    %v585 = vpow.pop %v584
    %v586 = vmul.f32 %v575, 1.442695
    %v587 = vpow.pop %v586
    %v588 = vmul.f32 %v576, 1.442695
    %v589 = vpow.pop %v588
    %v590 = vmul.f32 %v577, 1.442695
    %v591 = vpow.pop %v590
    %v592 = vmul.f32 %v578, 1.442695
    %v593 = vpow.pop %v592
    %v594 = vmul.f32 %v579, 1.442695
    %v595 = vpow.pop %v594
    %v596 = vadd.f32 %v581, 1.0
    %v597 = vadd.f32 %v583, 1.0
    %v598 = vadd.f32 %v585, 1.0
    %v599 = vadd.f32 %v587, 1.0
    %v600 = vadd.f32 %v589, 1.0
    %v601 = vadd.f32 %v591, 1.0
    %v602 = vadd.f32 %v593, 1.0
    %v603 = vadd.f32 %v595, 1.0
    %v604 = vrcp.pop %v596
    %v605 = vmul.f32 1.0, %v604
    %v606 = vrcp.pop %v597
    %v607 = vmul.f32 1.0, %v606
    %v608 = vrcp.pop %v598
    %v609 = vmul.f32 1.0, %v608
    %v610 = vrcp.pop %v599
    %v611 = vmul.f32 1.0, %v610
    %v612 = vrcp.pop %v600
    %v613 = vmul.f32 1.0, %v612
    %v614 = vrcp.pop %v601
    %v615 = vmul.f32 1.0, %v614
    %v616 = vrcp.pop %v602
    %v617 = vmul.f32 1.0, %v616
    %v618 = vrcp.pop %v603
    %v619 = vmul.f32 1.0, %v618
    %vm620 = vcmp.ne.f32.partialorder %v605, %v605
    %vm621 = vcmp.ne.f32.partialorder %v607, %v607
    %vm622 = vcmp.ne.f32.partialorder %v609, %v609
    %vm623 = vcmp.ne.f32.partialorder %v611, %v611
    %vm624 = vcmp.ne.f32.partialorder %v613, %v613
    %vm625 = vcmp.ne.f32.partialorder %v615, %v615
    %vm626 = vcmp.ne.f32.partialorder %v617, %v617
    %vm627 = vcmp.ne.f32.partialorder %v619, %v619
    %v628 = vsel %vm620, 0.0, %v605
    %v629 = vsel %vm621, 0.0, %v607
    %v630 = vsel %vm622, 0.0, %v609
    %v631 = vsel %vm623, 0.0, %v611
    %v632 = vsel %vm624, 0.0, %v613
    %v633 = vsel %vm625, 0.0, %v615
    %v634 = vsel %vm626, 0.0, %v617
    %v635 = vsel %vm627, 0.0, %v619
    %636 = vst [vmem:[#allocation2] sm:$0xff] %v628
    %637 = vst [vmem:[#allocation2 + $0x8] sm:$0xff] %v629
    %638 = vst [vmem:[#allocation2 + $0x10] sm:$0xff] %v630
    %639 = vst [vmem:[#allocation2 + $0x18] sm:$0xff] %v631
    %640 = vst [vmem:[#allocation2 + $0x20] sm:$0xff] %v632
    %641 = vst [vmem:[#allocation2 + $0x28] sm:$0xff] %v633
    %642 = vst [vmem:[#allocation2 + $0x30] sm:$0xff] %v634
    %643 = vst [vmem:[#allocation2 + $0x38] sm:$0xff] %v635
    // Predicated region
    $region38: #{autoencoder_forward.1} parent=1 // pred_check
      _
    $region39: #{autoencoder_forward.1} parent=1 // pred_check_branch
      %645 = sbr.rel (0) target = $region41
    $region40: #{autoencoder_forward.1} parent=1 // pred_region
      %s647 = ssub.s32 1024, 1024
      %648 = vsyncadd [#allocation3], %s647
      %s649 = sshll.u32 [#allocation2], 4
      %s650 = int_to_ptr.vmem [resolvable:$true] %s649
      %655 = dma.vmem_to_hbm [thread:$0]  %s650, 1024, %s9, [#allocation3], 128, 128, 8
    $region41: #{autoencoder_forward.1} parent=1 // pred_fallthru
      _
    // Predicated region
    $region42: #{autoencoder_forward.1} parent=1 // pred_check
      _
    $region43: #{autoencoder_forward.1} parent=1 // pred_check_branch
      %657 = sbr.rel (0) target = $region45
    $region44: #{autoencoder_forward.1} parent=1 // pred_region
      %658 = dma.done [#allocation3], 1024
    $region45: #{autoencoder_forward.1} parent=1 // pred_fallthru
      _
    %659 = vsyncpa [#allocation3], 1

</llo_original>
